<compile_context>
chip_gen: v5e
topology: v5e:2x2
jax: 0.10.0
libtpu: 0.0.40
codegen_flags: <defaults>
</compile_context>

<pallas_src>
import functools
import math

import jax
import jax.numpy as jnp
from jax.experimental import pallas as pl
from jax.experimental.pallas import tpu as pltpu


LANE = 128          # TPU lane width (last-dim vreg extent)
MAX_ROW_TILE = 512  # big row tiles ~= HBM roofline for simple copies


# ----------------------------- Pallas kernels ------------------------------ #

def _copy2_kernel(hl_ref, hr_ref, ol_ref, or_ref):
    # Lane-aligned fused path: the feature-dim slice is done by the input
    # index_map, so the body is a pure tiled copy for both tensors.
    ol_ref[...] = hl_ref[...]
    or_ref[...] = hr_ref[...]


def _copy1_kernel(x_ref, o_ref):
    o_ref[...] = x_ref[...]


def _slice_kernel(x_ref, o_ref, *, in_features):
    # Unaligned fallback: read the full feature row, write the static tail.
    o_ref[...] = x_ref[:, in_features:]


# ------------------------------ call wrappers ------------------------------ #

def _row_tile(rows):
    return rows if rows <= MAX_ROW_TILE else MAX_ROW_TILE


def _cut2_aligned(hl2d, hr2d, in_features, f_cut):
    rows, _ = hl2d.shape
    tr = _row_tile(rows)
    off = in_features // LANE
    in_spec = pl.BlockSpec((tr, LANE), lambda i, j: (i, j + off))
    out_spec = pl.BlockSpec((tr, LANE), lambda i, j: (i, j))
    return pl.pallas_call(
        _copy2_kernel,
        out_shape=(jax.ShapeDtypeStruct((rows, f_cut), hl2d.dtype),
                   jax.ShapeDtypeStruct((rows, f_cut), hr2d.dtype)),
        grid=(pl.cdiv(rows, tr), f_cut // LANE),
        in_specs=[in_spec, in_spec],
        out_specs=(out_spec, out_spec),
        compiler_params=pltpu.CompilerParams(
            dimension_semantics=("parallel", "parallel")),
    )(hl2d, hr2d)


def _cut_aligned(x2d, in_features, f_cut):
    rows, _ = x2d.shape
    tr = _row_tile(rows)
    off = in_features // LANE
    return pl.pallas_call(
        _copy1_kernel,
        out_shape=jax.ShapeDtypeStruct((rows, f_cut), x2d.dtype),
        grid=(pl.cdiv(rows, tr), f_cut // LANE),
        in_specs=[pl.BlockSpec((tr, LANE), lambda i, j: (i, j + off))],
        out_specs=pl.BlockSpec((tr, LANE), lambda i, j: (i, j)),
        compiler_params=pltpu.CompilerParams(
            dimension_semantics=("parallel", "parallel")),
    )(x2d)


def _cut_unaligned(x2d, in_features, f_cut):
    rows, f_total = x2d.shape
    tr = _row_tile(rows)
    return pl.pallas_call(
        functools.partial(_slice_kernel, in_features=in_features),
        out_shape=jax.ShapeDtypeStruct((rows, f_cut), x2d.dtype),
        grid=(pl.cdiv(rows, tr),),
        in_specs=[pl.BlockSpec((tr, f_total), lambda i: (i, 0))],
        out_specs=pl.BlockSpec((tr, f_cut), lambda i: (i, 0)),
        compiler_params=pltpu.CompilerParams(
            dimension_semantics=("parallel",)),
    )(x2d)


def feature_cut(X, in_features):
    """Pallas-backed Feature_cut.forward: (HL, HR) -> (HL[..., in:], HR[..., in:])."""
    HL, HR = X

    def flatten(x):
        lead = x.shape[:-1]
        f_total = x.shape[-1]
        rows = int(math.prod(lead)) if lead else 1
        return x.reshape(rows, f_total), lead, f_total

    hl2d, lead_l, ftot_l = flatten(HL)
    hr2d, lead_r, ftot_r = flatten(HR)
    fcut_l = ftot_l - in_features
    fcut_r = ftot_r - in_features

    def aligned(f_cut):
        return in_features % LANE == 0 and f_cut % LANE == 0 and f_cut > 0

    if (hl2d.shape == hr2d.shape and hl2d.dtype == hr2d.dtype
            and aligned(fcut_l)):
        # Single fused launch for both tensors.
        ol2d, or2d = _cut2_aligned(hl2d, hr2d, in_features, fcut_l)
    else:
        def cut_one(x2d, f_cut):
            if f_cut <= 0:
                return x2d[:, x2d.shape[1]:]          # empty result, no kernel
            if aligned(f_cut):
                return _cut_aligned(x2d, in_features, f_cut)
            return _cut_unaligned(x2d, in_features, f_cut)

        ol2d = cut_one(hl2d, fcut_l)
        or2d = cut_one(hr2d, fcut_r)

    hl_out = ol2d.reshape(lead_l + (max(fcut_l, 0),))
    hr_out = or2d.reshape(lead_r + (max(fcut_r, 0),))
    return hl_out, hr_out


# --------------------------------- main ------------------------------------ #

if __name__ == "__main__":
    key = jax.random.PRNGKey(0)
    k_l, k_r, k_l2, k_r2 = jax.random.split(key, 4)

    # --- main case: 128-lane-aligned cut -> fused single-launch path ---
    B, S, F_TOTAL = 2, 64, 256
    IN_FEATURES = 128
    HL = jax.random.normal(k_l, (B, S, F_TOTAL), jnp.float32)
    HR = jax.random.normal(k_r, (B, S, F_TOTAL), jnp.float32)

    hl, hr = feature_cut((HL, HR), IN_FEATURES)
    hl, hr = jax.block_until_ready((hl, hr))

    assert hl.shape == (B, S, F_TOTAL - IN_FEATURES)
    assert hr.shape == (B, S, F_TOTAL - IN_FEATURES)
    assert bool(jnp.array_equal(hl, HL[..., IN_FEATURES:]))
    assert bool(jnp.array_equal(hr, HR[..., IN_FEATURES:]))

    # --- secondary case: unaligned cut + mismatched shapes -> fallback path ---
    HL2 = jax.random.normal(k_l2, (2, 8, 72), jnp.float32)
    HR2 = jax.random.normal(k_r2, (3, 5, 72), jnp.float32)
    IN2 = 40
    hl2, hr2 = feature_cut((HL2, HR2), IN2)
    hl2, hr2 = jax.block_until_ready((hl2, hr2))
    assert bool(jnp.array_equal(hl2, HL2[..., IN2:]))
    assert bool(jnp.array_equal(hr2, HR2[..., IN2:]))

    print("KERNEL_OK")
</pallas_src>

<mosaic_0001>
module attributes {stable_mosaic.version = 11 : i64} {
  func.func @_copy2_kernel(%arg0: i32, %arg1: i32, %arg2: memref<128x128xf32, #tpu.memory_space<vmem>>, %arg3: memref<128x128xf32, #tpu.memory_space<vmem>>, %arg4: memref<128x128xf32, #tpu.memory_space<vmem>>, %arg5: memref<128x128xf32, #tpu.memory_space<vmem>>) attributes {dimension_semantics = [#tpu.dimension_semantics<parallel>, #tpu.dimension_semantics<parallel>], iteration_bounds = array<i64: 1, 1>, scalar_prefetch = 0 : i64, scratch_operands = 0 : i64, tpu.core_type = #tpu.core_type<tc>, window_params = [{transform_indices = @transform_0, window_bounds = array<i64: 128, 128>}, {transform_indices = @transform_1, window_bounds = array<i64: 128, 128>}, {transform_indices = @transform_2, window_bounds = array<i64: 128, 128>}, {transform_indices = @transform_3, window_bounds = array<i64: 128, 128>}]} {
    %c0 = arith.constant 0 : index
    %c0_0 = arith.constant 0 : index
    %0 = vector.load %arg2[%c0, %c0_0] : memref<128x128xf32, #tpu.memory_space<vmem>>, vector<128x128xf32>
    %c0_1 = arith.constant 0 : index
    %c0_2 = arith.constant 0 : index
    %1 = vector.load %arg4[%c0_1, %c0_2] : memref<128x128xf32, #tpu.memory_space<vmem>>, vector<128x128xf32>
    tpu.vector_store %arg4[%c0_1, %c0_2], %0 {strides = array<i32>} : memref<128x128xf32, #tpu.memory_space<vmem>>, vector<128x128xf32>,
    %c0_3 = arith.constant 0 : index
    %c0_4 = arith.constant 0 : index
    %2 = vector.load %arg3[%c0_3, %c0_4] : memref<128x128xf32, #tpu.memory_space<vmem>>, vector<128x128xf32>
    %c0_5 = arith.constant 0 : index
    %c0_6 = arith.constant 0 : index
    %3 = vector.load %arg5[%c0_5, %c0_6] : memref<128x128xf32, #tpu.memory_space<vmem>>, vector<128x128xf32>
    tpu.vector_store %arg5[%c0_5, %c0_6], %2 {strides = array<i32>} : memref<128x128xf32, #tpu.memory_space<vmem>>, vector<128x128xf32>,
    return
  }
  func.func @transform_0(%arg0: i32, %arg1: i32) -> (i32, i32) {
    %c1_i32 = arith.constant 1 : i32
    %0 = arith.addi %arg1, %c1_i32 : i32
    %c0_i32 = arith.constant 0 : i32
    return %arg0, %0 : i32, i32
  }
  func.func @transform_1(%arg0: i32, %arg1: i32) -> (i32, i32) {
    %c1_i32 = arith.constant 1 : i32
    %0 = arith.addi %arg1, %c1_i32 : i32
    %c0_i32 = arith.constant 0 : i32
    return %arg0, %0 : i32, i32
  }
  func.func @transform_2(%arg0: i32, %arg1: i32) -> (i32, i32) {
    %c0_i32 = arith.constant 0 : i32
    return %arg0, %arg1 : i32, i32
  }
  func.func @transform_3(%arg0: i32, %arg1: i32) -> (i32, i32) {
    %c0_i32 = arith.constant 0 : i32
    return %arg0, %arg1 : i32, i32
  }
}

</mosaic_0001>

<llo_original>
// kernel: tpu_custom_call.1
$region0: #{tpu_custom_call.1}
  #allocation0 [shape = 'u32[]', space=smem, size = 0x4, offset = 0x4, fixed_abs, tag = 'smem constant byte address 0x4 - core index']
  #allocation1 [shape = 'u32[72,128]{1,0:T(1,128)}', space=vmem, size = 0x9000, scoped, tag = 'internal scratch']
  %s0 = inlined_call_operand.hbm [shape: f32[128,256], index: 0, kind: input, shape index: {}]
  %s1 = inlined_call_operand.hbm [shape: f32[128,256], index: 1, kind: input, shape index: {}]
  %s2 = inlined_call_operand.hbm [shape: f32[128,128], index: 2, kind: output, shape index: {0}]
  %s3 = inlined_call_operand.hbm [shape: f32[128,128], index: 3, kind: output, shape index: {1}]
  %4 = xla_tuple %s2, %s3
  %s5 = sld [smem:[#allocation0]]
  $region34: #{tpu_custom_call.1} parent=0
    _
  %s7 = ssub.s32 1, %s5
  %s8 = scalar_select 0, %s7, %s5
  $region1: #{tpu_custom_call.1} parent=0
    #allocation2 [shape = 'u8[65536]{0}', space=vmem, size = 0x10000, scoped, tag = 'input window, operand 0, single buffered']
    #allocation3 [shape = 's32[1]{0}', space=sflag, size = 0x4, scoped, tag = 'scoped memory for tpu_custom_call.1']
    #allocation4 [shape = 's32[1]{0}', space=sflag, size = 0x4, scoped, tag = 'scoped memory for tpu_custom_call.1']
    #allocation5 [shape = 'u8[65536]{0}', space=vmem, size = 0x10000, scoped, tag = 'input window, operand 1, single buffered']
    #allocation6 [shape = 's32[1]{0}', space=sflag, size = 0x4, scoped, tag = 'scoped memory for tpu_custom_call.1']
    #allocation7 [shape = 'u8[65536]{0}', space=vmem, size = 0x10000, scoped, tag = 'output window, operand 0, single buffered']
    #allocation8 [shape = 'u8[65536]{0}', space=vmem, size = 0x10000, scoped, tag = 'output window, operand 1, single buffered']
    #allocation9 [shape = 's32[1]{0}', space=sflag, size = 0x4, scoped, tag = 'scoped memory for tpu_custom_call.1']
    %9 = vsyncpa [#allocation3], 0
    %10 = vsyncpa [#allocation6], 0
    %11 = vsyncpa [#allocation4], 0
    %12 = vsyncpa [#allocation9], 0
    // Predicated region
    $region2: #{tpu_custom_call.1} parent=1 // pred_check
      _
    $region3: #{tpu_custom_call.1} parent=1 // pred_check_branch
      %14 = sbr.rel (0) target = $region5
    $region4: #{tpu_custom_call.1} parent=1 // pred_region
      %s15 = sadd.s32 0, 1
      %17 = vsyncadd [#allocation3], 0
      %s18 = smul.addr %s15, 8
      %s19 = scalar_lea.hbm %s0, %s18
      %s20 = sshll.u32 %s19, 4
      %s21 = int_to_ptr.hbm [resolvable:$true] %s20
      %s22 = sshll.u32 [#allocation2], 4
      %s23 = int_to_ptr.vmem [resolvable:$true] %s22
      %28 = dma.hbm_to_vmem [thread:$0]  %s21, 2048, %s23, [#allocation3], 256, 128, 8
    $region5: #{tpu_custom_call.1} parent=1 // pred_fallthru
      _
    // Predicated region
    $region6: #{tpu_custom_call.1} parent=1 // pred_check
      _
    $region7: #{tpu_custom_call.1} parent=1 // pred_check_branch
      %30 = sbr.rel (0) target = $region9
    $region8: #{tpu_custom_call.1} parent=1 // pred_region
      %s31 = sadd.s32 0, 1
      %33 = vsyncadd [#allocation6], 0
      %s34 = smul.addr %s31, 8
      %s35 = scalar_lea.hbm %s1, %s34
      %s36 = sshll.u32 %s35, 4
      %s37 = int_to_ptr.hbm [resolvable:$true] %s36
      %s38 = sshll.u32 [#allocation5], 4
      %s39 = int_to_ptr.vmem [resolvable:$true] %s38
      %44 = dma.hbm_to_vmem [thread:$0]  %s37, 2048, %s39, [#allocation6], 256, 128, 8
    $region9: #{tpu_custom_call.1} parent=1 // pred_fallthru
      _
    // Predicated region
    $region10: #{tpu_custom_call.1} parent=1 // pred_check
      _
    $region11: #{tpu_custom_call.1} parent=1 // pred_check_branch
      %46 = sbr.rel (0) target = $region13
    $region12: #{tpu_custom_call.1} parent=1 // pred_region
      %48 = dma.done [#allocation3], 2048
    $region13: #{tpu_custom_call.1} parent=1 // pred_fallthru
      _
    // Predicated region
    $region14: #{tpu_custom_call.1} parent=1 // pred_check
      _
    $region15: #{tpu_custom_call.1} parent=1 // pred_check_branch
      %50 = sbr.rel (0) target = $region17
    $region16: #{tpu_custom_call.1} parent=1 // pred_region
      %52 = dma.done [#allocation6], 2048
    $region17: #{tpu_custom_call.1} parent=1 // pred_fallthru
      _
    %s53 = sadd.s32 0, 1
    %s54 = sadd.s32 0, 1
    %v55 = vld [vmem:[#allocation2] sm:$0xff]
    %v56 = vld [vmem:[#allocation2 + $0x8] sm:$0xff]
    %v57 = vld [vmem:[#allocation2 + $0x10] sm:$0xff]
    %v58 = vld [vmem:[#allocation2 + $0x18] sm:$0xff]
    %v59 = vld [vmem:[#allocation2 + $0x20] sm:$0xff]
    %v60 = vld [vmem:[#allocation2 + $0x28] sm:$0xff]
    %v61 = vld [vmem:[#allocation2 + $0x30] sm:$0xff]
    %v62 = vld [vmem:[#allocation2 + $0x38] sm:$0xff]
    %v63 = vld [vmem:[#allocation2 + $0x40] sm:$0xff]
    %v64 = vld [vmem:[#allocation2 + $0x48] sm:$0xff]
    %v65 = vld [vmem:[#allocation2 + $0x50] sm:$0xff]
    %v66 = vld [vmem:[#allocation2 + $0x58] sm:$0xff]
    %v67 = vld [vmem:[#allocation2 + $0x60] sm:$0xff]
    %v68 = vld [vmem:[#allocation2 + $0x68] sm:$0xff]
    %v69 = vld [vmem:[#allocation2 + $0x70] sm:$0xff]
    %v70 = vld [vmem:[#allocation2 + $0x78] sm:$0xff]
    %71 = vst [vmem:[#allocation7] sm:$0xff] %v55
    %72 = vst [vmem:[#allocation7 + $0x8] sm:$0xff] %v56
    %73 = vst [vmem:[#allocation7 + $0x10] sm:$0xff] %v57
    %74 = vst [vmem:[#allocation7 + $0x18] sm:$0xff] %v58
    %75 = vst [vmem:[#allocation7 + $0x20] sm:$0xff] %v59
    %76 = vst [vmem:[#allocation7 + $0x28] sm:$0xff] %v60
    %77 = vst [vmem:[#allocation7 + $0x30] sm:$0xff] %v61
    %78 = vst [vmem:[#allocation7 + $0x38] sm:$0xff] %v62
    %79 = vst [vmem:[#allocation7 + $0x40] sm:$0xff] %v63
    %80 = vst [vmem:[#allocation7 + $0x48] sm:$0xff] %v64
    %81 = vst [vmem:[#allocation7 + $0x50] sm:$0xff] %v65
    %82 = vst [vmem:[#allocation7 + $0x58] sm:$0xff] %v66
    %83 = vst [vmem:[#allocation7 + $0x60] sm:$0xff] %v67
    %84 = vst [vmem:[#allocation7 + $0x68] sm:$0xff] %v68
    %85 = vst [vmem:[#allocation7 + $0x70] sm:$0xff] %v69
    %86 = vst [vmem:[#allocation7 + $0x78] sm:$0xff] %v70
    %v87 = vld [vmem:[#allocation5] sm:$0xff]
    %v88 = vld [vmem:[#allocation5 + $0x8] sm:$0xff]
    %v89 = vld [vmem:[#allocation5 + $0x10] sm:$0xff]
    %v90 = vld [vmem:[#allocation5 + $0x18] sm:$0xff]
    %v91 = vld [vmem:[#allocation5 + $0x20] sm:$0xff]
    %v92 = vld [vmem:[#allocation5 + $0x28] sm:$0xff]
    %v93 = vld [vmem:[#allocation5 + $0x30] sm:$0xff]
    %v94 = vld [vmem:[#allocation5 + $0x38] sm:$0xff]
    %v95 = vld [vmem:[#allocation5 + $0x40] sm:$0xff]
    %v96 = vld [vmem:[#allocation5 + $0x48] sm:$0xff]
    %v97 = vld [vmem:[#allocation5 + $0x50] sm:$0xff]
    %v98 = vld [vmem:[#allocation5 + $0x58] sm:$0xff]
    %v99 = vld [vmem:[#allocation5 + $0x60] sm:$0xff]
    %v100 = vld [vmem:[#allocation5 + $0x68] sm:$0xff]
    %v101 = vld [vmem:[#allocation5 + $0x70] sm:$0xff]
    %v102 = vld [vmem:[#allocation5 + $0x78] sm:$0xff]
    %103 = vst [vmem:[#allocation8] sm:$0xff] %v87
    %104 = vst [vmem:[#allocation8 + $0x8] sm:$0xff] %v88
    %105 = vst [vmem:[#allocation8 + $0x10] sm:$0xff] %v89
    %106 = vst [vmem:[#allocation8 + $0x18] sm:$0xff] %v90
    %107 = vst [vmem:[#allocation8 + $0x20] sm:$0xff] %v91
    %108 = vst [vmem:[#allocation8 + $0x28] sm:$0xff] %v92
    %109 = vst [vmem:[#allocation8 + $0x30] sm:$0xff] %v93
    %110 = vst [vmem:[#allocation8 + $0x38] sm:$0xff] %v94
    %111 = vst [vmem:[#allocation8 + $0x40] sm:$0xff] %v95
    %112 = vst [vmem:[#allocation8 + $0x48] sm:$0xff] %v96
    %113 = vst [vmem:[#allocation8 + $0x50] sm:$0xff] %v97
    %114 = vst [vmem:[#allocation8 + $0x58] sm:$0xff] %v98
    %115 = vst [vmem:[#allocation8 + $0x60] sm:$0xff] %v99
    %116 = vst [vmem:[#allocation8 + $0x68] sm:$0xff] %v100
    %117 = vst [vmem:[#allocation8 + $0x70] sm:$0xff] %v101
    %118 = vst [vmem:[#allocation8 + $0x78] sm:$0xff] %v102
    // Predicated region
    $region18: #{tpu_custom_call.1} parent=1 // pred_check
      _
    $region19: #{tpu_custom_call.1} parent=1 // pred_check_branch
      %120 = sbr.rel (0) target = $region21
    $region20: #{tpu_custom_call.1} parent=1 // pred_region
      %122 = vsyncadd [#allocation4], 0
      %s123 = sshll.u32 [#allocation7], 4
      %s124 = int_to_ptr.vmem [resolvable:$true] %s123
      %s125 = sshll.u32 %s2, 4
      %s126 = int_to_ptr.hbm [resolvable:$true] %s125
      %131 = dma.vmem_to_hbm [thread:$0]  %s124, 2048, %s126, [#allocation4], 128, 128, 8
    $region21: #{tpu_custom_call.1} parent=1 // pred_fallthru
      _
    // Predicated region
    $region22: #{tpu_custom_call.1} parent=1 // pred_check
      _
    $region23: #{tpu_custom_call.1} parent=1 // pred_check_branch
      %133 = sbr.rel (0) target = $region25
    $region24: #{tpu_custom_call.1} parent=1 // pred_region
      %135 = vsyncadd [#allocation9], 0
      %s136 = sshll.u32 [#allocation8], 4
      %s137 = int_to_ptr.vmem [resolvable:$true] %s136
      %s138 = sshll.u32 %s3, 4
      %s139 = int_to_ptr.hbm [resolvable:$true] %s138
      %144 = dma.vmem_to_hbm [thread:$0]  %s137, 2048, %s139, [#allocation9], 128, 128, 8
    $region25: #{tpu_custom_call.1} parent=1 // pred_fallthru
      _
    // Predicated region
    $region26: #{tpu_custom_call.1} parent=1 // pred_check
      _
    $region27: #{tpu_custom_call.1} parent=1 // pred_check_branch
      %146 = sbr.rel (0) target = $region29
    $region28: #{tpu_custom_call.1} parent=1 // pred_region
      %148 = dma.done [#allocation4], 2048
    $region29: #{tpu_custom_call.1} parent=1 // pred_fallthru
      _
    // Predicated region
    $region30: #{tpu_custom_call.1} parent=1 // pred_check
      _
    $region31: #{tpu_custom_call.1} parent=1 // pred_check_branch
      %150 = sbr.rel (0) target = $region33
    $region32: #{tpu_custom_call.1} parent=1 // pred_region
      %152 = dma.done [#allocation9], 2048
    $region33: #{tpu_custom_call.1} parent=1 // pred_fallthru
      _
    %153 = vsyncpa [#allocation3], 1
    %154 = vsyncpa [#allocation6], 1
    %155 = vsyncpa [#allocation4], 1
    %156 = vsyncpa [#allocation9], 1

</llo_original>
